<compile_context>
chip_gen: v5e
topology: v5e:2x2
jax: 0.10.0
libtpu: 0.0.40
codegen_flags: <defaults>
</compile_context>

<pallas_src>
import jax
import jax.numpy as jnp
import numpy as np
from jax import lax
from jax.experimental import pallas as pl
from jax.experimental.pallas import tpu as pltpu


ROW_TILE_CAP = 512   # im2col rows per grid step (multiple of 8, ~roofline sweet spot)


# ----------------------------------------------------------------------------
# Kernel: lane-dense im2col matmul + bias.
# ----------------------------------------------------------------------------
def _conv_matmul_kernel(lhs_ref, w_ref, b_ref, o_ref):
    # lhs_ref: (row_tile, G*K*K*Cin)  im2col patches for row_tile output rows
    # w_ref  : (G*K*K*Cin, G*Cout)    block-diagonal effective conv weight
    # b_ref  : (1, G*Cout)            bias tiled once per output column
    # o_ref  : (row_tile, G*Cout)     lane-dense output block
    acc = jnp.dot(lhs_ref[...], w_ref[...], preferred_element_type=jnp.float32)
    o_ref[...] = (acc + b_ref[...]).astype(o_ref.dtype)


def _choose_w_group(w_out, c_out, kkc):
    """Pick G = output-width positions packed into one lane block.

    Prefer G with G*Cout == 128 and G*K*K*Cin a multiple of 128: the output
    block is exactly lane-dense and the RHS size / zero-MAC waste stop scaling
    with W. Otherwise fall back to G == w_out (blocks equal full array dims,
    which is always BlockSpec-legal)."""
    upper = min(w_out, max(1, 128 // max(c_out, 1)))
    for g in range(upper, 0, -1):
        if g == w_out or w_out % g:
            continue
        if g * c_out == 128 and (g * kkc) % 128 == 0:
            return g
    return w_out


def lora_conv2d_forward(x_nchw, base_weight, base_bias, lora_A, lora_B, scale,
                        *, stride=1, padding=1, dilation=1, groups=1,
                        use_bf16_inputs=False):
    """Forward of LoRA_Conv2d. x_nchw: (N, Cin, H, W) float32. Returns NCHW."""
    # Fail loudly on unsupported conv configs (review correctness concern).
    assert stride == 1 and dilation == 1 and groups == 1, (
        "TODO(synk): only stride=1, dilation=1, groups=1 are implemented.")
    n, c_in, h, w = x_nchw.shape
    c_out, c_in_w, k, k2 = base_weight.shape
    assert k == k2 and c_in_w == c_in, "square kernel, groups=1 expected"
    h_out = h + 2 * padding - k + 1
    w_out = w + 2 * padding - k + 1
    kkc = k * k * c_in

    if base_bias is None:
        base_bias = jnp.zeros((c_out,), x_nchw.dtype)

    # --- glue (XLA): effective weight = base + scale * (B @ A) ---------------
    # Tiny matmul; a dedicated pallas_call + HBM round trip costs more than the
    # math itself, so it stays in the wrapper and fuses with the transpose.
    w_eff = base_weight + scale * (lora_B @ lora_A).reshape(base_weight.shape)
    # (Cout, Cin, K, K) -> (K*K*Cin, Cout), matching the im2col tap ordering.
    w_mat = jnp.transpose(w_eff, (2, 3, 1, 0)).reshape(kkc, c_out)

    # Group G width positions per lane block (G*Cout lanes; 128 when possible).
    g = _choose_w_group(w_out, c_out, kkc)
    w_groups = w_out // g
    lanes_blk = g * c_out
    lhs_cols_blk = g * kkc

    # Block-diagonal weight kron(I_G, w_mat): the matmul emits the output
    # directly in the lane-dense (rows, G*Cout) layout, so the kernel needs no
    # in-kernel reshape/relayout and no masked stores.
    w_bd = jnp.kron(jnp.eye(g, dtype=w_mat.dtype), w_mat)      # (G*kkc, G*Cout)
    bias_row = jnp.tile(base_bias.reshape(1, c_out), (1, g))   # (1, G*Cout)

    # --- glue (XLA): NCHW -> NHWC, spatial pad, im2col ------------------------
    # TODO(synk): for large feature maps, move im2col into the kernel (haloed
    # (tile_H+2, W+2, Cin) input tile + K*K static VMEM taps) to avoid the
    # K*K-fold HBM blowup of the materialized patch matrix.
    x_nhwc = jnp.transpose(x_nchw, (0, 2, 3, 1))
    x_pad = jnp.pad(x_nhwc,
                    ((0, 0), (padding, padding), (padding, padding), (0, 0)))
    taps = [x_pad[:, kh:kh + h_out, kw:kw + w_out, :]
            for kh in range(k) for kw in range(k)]
    patches = jnp.concatenate(taps, axis=-1)          # (N, H, W, K*K*Cin)
    lhs = patches.reshape(n * h_out, w_out * kkc)     # (N*H, W*K*K*Cin)

    # Optional bf16 MXU inputs (v6e/v7x are bf16-native; f32 inputs are
    # multi-pass emulated). Accumulation stays f32 via preferred_element_type.
    if use_bf16_inputs:
        lhs = lhs.astype(jnp.bfloat16)
        w_bd = w_bd.astype(jnp.bfloat16)

    # --- row tiling: capped tile, no unconditional 2-way split ---------------
    m_rows = n * h_out
    row_tile = m_rows if m_rows <= ROW_TILE_CAP else ROW_TILE_CAP
    m_pad = pl.cdiv(m_rows, row_tile) * row_tile
    if m_pad != m_rows:
        lhs = jnp.pad(lhs, ((0, m_pad - m_rows), (0, 0)))
    grid = (m_pad // row_tile, w_groups)

    # --- Pallas: the conv as a lane-dense matmul ------------------------------
    def call(buffered_consts):
        # Constant RHS / bias blocks never change across the grid -> request a
        # single VMEM buffer for them (saves a never-swapped copy of w_bd).
        const_kw = dict(pipeline_mode=pl.Buffered(1)) if buffered_consts else {}
        return pl.pallas_call(
            _conv_matmul_kernel,
            out_shape=jax.ShapeDtypeStruct((m_pad, w_out * c_out), jnp.float32),
            grid=grid,
            in_specs=[
                pl.BlockSpec((row_tile, lhs_cols_blk), lambda i, j: (i, j)),
                pl.BlockSpec((g * kkc, lanes_blk), lambda i, j: (0, 0),
                             **const_kw),
                pl.BlockSpec((1, lanes_blk), lambda i, j: (0, 0),
                             **const_kw),
            ],
            out_specs=pl.BlockSpec((row_tile, lanes_blk), lambda i, j: (i, j)),
            compiler_params=pltpu.CompilerParams(
                dimension_semantics=("parallel", "parallel")),
        )(lhs, w_bd, bias_row)

    try:
        out_flat = call(True)
    except Exception:
        # Older toolchains may reject Buffered(1); correctness is unaffected.
        out_flat = call(False)

    # --- glue (XLA): drop row padding, split lanes back, return NCHW ----------
    out_flat = out_flat[:m_rows]
    out_nhwc = out_flat.reshape(n, h_out, w_out, c_out)
    return jnp.transpose(out_nhwc, (0, 3, 1, 2))


# ----------------------------------------------------------------------------
if __name__ == "__main__":
    # Module hyperparameters (small, consistent with a Conv2d base module).
    N, C_IN, H, W = 2, 4, 16, 16
    C_OUT, K = 8, 3
    RANK = 4
    SCALE = 2.0
    PADDING = 1

    key = jax.random.PRNGKey(0)
    kx, kw_, kb, ka, kB = jax.random.split(key, 5)

    x = jax.random.normal(kx, (N, C_IN, H, W), jnp.float32)
    base_weight = 0.1 * jax.random.normal(kw_, (C_OUT, C_IN, K, K), jnp.float32)
    base_bias = 0.1 * jax.random.normal(kb, (C_OUT,), jnp.float32)

    # lora_A: kaiming_uniform_(a=sqrt(rank)) on shape (rank*K, Cin*K)
    fan_in = C_IN * K
    gain = np.sqrt(2.0 / (1.0 + RANK))        # a = sqrt(rank) -> 2/(1+a^2)
    bound = gain * np.sqrt(3.0 / fan_in)
    lora_A = jax.random.uniform(ka, (RANK * K, C_IN * K), jnp.float32,
                                minval=-bound, maxval=bound)
    # lora_B is zero-initialized in the module; use small random values here so
    # the LoRA branch actually contributes to the output being tested.
    lora_B = 0.05 * jax.random.normal(kB, (C_OUT * K, RANK * K), jnp.float32)

    out = lora_conv2d_forward(x, base_weight, base_bias, lora_A, lora_B,
                              SCALE, padding=PADDING)
    out = jax.block_until_ready(out)

    # Pure-JAX reference for a correctness sanity check (documented tolerance:
    # the MXU matmul at default precision is not bit-exact f32).
    w_eff_ref = base_weight + SCALE * (lora_B @ lora_A).reshape(C_OUT, C_IN, K, K)
    ref = lax.conv_general_dilated(
        x, w_eff_ref, window_strides=(1, 1),
        padding=[(PADDING, PADDING), (PADDING, PADDING)],
        dimension_numbers=("NCHW", "OIHW", "NCHW"),
    ) + base_bias.reshape(1, C_OUT, 1, 1)

    assert out.shape == (N, C_OUT, H, W)
    np.testing.assert_allclose(np.asarray(out), np.asarray(ref),
                               rtol=1e-4, atol=1e-4)
    print("KERNEL_OK")
</pallas_src>

<mosaic_0001>
module attributes {stable_mosaic.version = 11 : i64} {
  func.func @_conv_matmul_kernel(%arg0: i32, %arg1: i32, %arg2: memref<32x576xf32, #tpu.memory_space<vmem>>, %arg3: memref<576x128xf32, #tpu.memory_space<vmem>>, %arg4: memref<1x128xf32, #tpu.memory_space<vmem>>, %arg5: memref<32x128xf32, #tpu.memory_space<vmem>>) attributes {dimension_semantics = [#tpu.dimension_semantics<parallel>, #tpu.dimension_semantics<parallel>], iteration_bounds = array<i64: 1, 1>, scalar_prefetch = 0 : i64, scratch_operands = 0 : i64, tpu.core_type = #tpu.core_type<tc>, window_params = [{transform_indices = @transform_0, window_bounds = array<i64: 32, 576>}, {pipeline_mode = #tpu.pipeline_mode<synchronous>, transform_indices = @transform_1, window_bounds = array<i64: 576, 128>}, {pipeline_mode = #tpu.pipeline_mode<synchronous>, transform_indices = @transform_2, window_bounds = array<i64: 1, 128>}, {transform_indices = @transform_3, window_bounds = array<i64: 32, 128>}]} {
    %c0 = arith.constant 0 : index
    %c0_0 = arith.constant 0 : index
    %0 = vector.load %arg2[%c0, %c0_0] : memref<32x576xf32, #tpu.memory_space<vmem>>, vector<32x576xf32>
    %c0_1 = arith.constant 0 : index
    %c0_2 = arith.constant 0 : index
    %1 = vector.load %arg3[%c0_1, %c0_2] : memref<576x128xf32, #tpu.memory_space<vmem>>, vector<576x128xf32>
    %cst = arith.constant dense<0.000000e+00> : vector<32x128xf32>
    %2 = tpu.matmul %0, %1, %cst {dimension_numbers = #tpu.dot_dimension_numbers<[1], [0], [0], [1], [0, 0, 1, 1], [], []>} : vector<32x576xf32>, vector<576x128xf32>, vector<32x128xf32> -> vector<32x128xf32>
    %c0_3 = arith.constant 0 : index
    %c0_4 = arith.constant 0 : index
    %3 = vector.load %arg4[%c0_3, %c0_4] : memref<1x128xf32, #tpu.memory_space<vmem>>, vector<1x128xf32>
    %4 = vector.broadcast %3 : vector<1x128xf32> to vector<32x128xf32>
    %5 = arith.addf %2, %4 : vector<32x128xf32>
    %c0_5 = arith.constant 0 : index
    %c0_6 = arith.constant 0 : index
    %6 = vector.load %arg5[%c0_5, %c0_6] : memref<32x128xf32, #tpu.memory_space<vmem>>, vector<32x128xf32>
    tpu.vector_store %arg5[%c0_5, %c0_6], %5 {strides = array<i32>} : memref<32x128xf32, #tpu.memory_space<vmem>>, vector<32x128xf32>,
    return
  }
  func.func @transform_0(%arg0: i32, %arg1: i32) -> (i32, i32) {
    %c0_i32 = arith.constant 0 : i32
    return %arg0, %arg1 : i32, i32
  }
  func.func @transform_1(%arg0: i32, %arg1: i32) -> (i32, i32) {
    %c0_i32 = arith.constant 0 : i32
    %c0_i32_0 = arith.constant 0 : i32
    %c0_i32_1 = arith.constant 0 : i32
    return %c0_i32, %c0_i32_0 : i32, i32
  }
  func.func @transform_2(%arg0: i32, %arg1: i32) -> (i32, i32) {
    %c0_i32 = arith.constant 0 : i32
    %c0_i32_0 = arith.constant 0 : i32
    %c0_i32_1 = arith.constant 0 : i32
    return %c0_i32, %c0_i32_0 : i32, i32
  }
  func.func @transform_3(%arg0: i32, %arg1: i32) -> (i32, i32) {
    %c0_i32 = arith.constant 0 : i32
    return %arg0, %arg1 : i32, i32
  }
}

module attributes {stable_mosaic.version = 11 : i64} {
  func.func @_conv_matmul_kernel(%arg0: i32, %arg1: i32, %arg2: memref<32x576xf32, #tpu.memory_space<vmem>>, %arg3: memref<576x128xf32, #tpu.memory_space<vmem>>, %arg4: memref<1x128xf32, #tpu.memory_space<vmem>>, %arg5: memref<32x128xf32, #tpu.memory_space<vmem>>) attributes {dimension_semantics = [#tpu.dimension_semantics<parallel>, #tpu.dimension_semantics<parallel>], iteration_bounds = array<i64: 1, 1>, scalar_prefetch = 0 : i64, scratch_operands = 0 : i64, tpu.core_type = #tpu.core_type<tc>, window_params = [{transform_indices = @transform_0, window_bounds = array<i64: 32, 576>}, {pipeline_mode = #tpu.pipeline_mode<synchronous>, transform_indices = @transform_1, window_bounds = array<i64: 576, 128>}, {pipeline_mode = #tpu.pipeline_mode<synchronous>, transform_indices = @transform_2, window_bounds = array<i64: 1, 128>}, {transform_indices = @transform_3, window_bounds = array<i64: 32, 128>}]} {
    %c0 = arith.constant 0 : index
    %c0_0 = arith.constant 0 : index
    %0 = vector.load %arg2[%c0, %c0_0] : memref<32x576xf32, #tpu.memory_space<vmem>>, vector<32x576xf32>
    %c0_1 = arith.constant 0 : index
    %c0_2 = arith.constant 0 : index
    %1 = vector.load %arg3[%c0_1, %c0_2] : memref<576x128xf32, #tpu.memory_space<vmem>>, vector<576x128xf32>
    %cst = arith.constant dense<0.000000e+00> : vector<32x128xf32>
    %2 = tpu.matmul %0, %1, %cst {dimension_numbers = #tpu.dot_dimension_numbers<[1], [0], [0], [1], [0, 0, 1, 1], [], []>} : vector<32x576xf32>, vector<576x128xf32>, vector<32x128xf32> -> vector<32x128xf32>
    %c0_3 = arith.constant 0 : index
    %c0_4 = arith.constant 0 : index
    %3 = vector.load %arg4[%c0_3, %c0_4] : memref<1x128xf32, #tpu.memory_space<vmem>>, vector<1x128xf32>
    %4 = vector.broadcast %3 : vector<1x128xf32> to vector<32x128xf32>
    %5 = arith.addf %2, %4 : vector<32x128xf32>
    %c0_5 = arith.constant 0 : index
    %c0_6 = arith.constant 0 : index
    %6 = vector.load %arg5[%c0_5, %c0_6] : memref<32x128xf32, #tpu.memory_space<vmem>>, vector<32x128xf32>
    tpu.vector_store %arg5[%c0_5, %c0_6], %5 {strides = array<i32>} : memref<32x128xf32, #tpu.memory_space<vmem>>, vector<32x128xf32>,
    return
  }
  func.func @transform_0(%arg0: i32, %arg1: i32) -> (i32, i32) {
    %c0_i32 = arith.constant 0 : i32
    return %arg0, %arg1 : i32, i32
  }
  func.func @transform_1(%arg0: i32, %arg1: i32) -> (i32, i32) {
    %c0_i32 = arith.constant 0 : i32
    %c0_i32_0 = arith.constant 0 : i32
    %c0_i32_1 = arith.constant 0 : i32
    return %c0_i32, %c0_i32_0 : i32, i32
  }
  func.func @transform_2(%arg0: i32, %arg1: i32) -> (i32, i32) {
    %c0_i32 = arith.constant 0 : i32
    %c0_i32_0 = arith.constant 0 : i32
    %c0_i32_1 = arith.constant 0 : i32
    return %c0_i32, %c0_i32_0 : i32, i32
  }
  func.func @transform_3(%arg0: i32, %arg1: i32) -> (i32, i32) {
    %c0_i32 = arith.constant 0 : i32
    return %arg0, %arg1 : i32, i32
  }
}

</mosaic_0001>

<llo_original>
// kernel: tpu_custom_call.1
$region0: #{tpu_custom_call.1}
  #allocation0 [shape = 'u32[]', space=smem, size = 0x4, offset = 0x4, fixed_abs, tag = 'smem constant byte address 0x4 - core index']
  #allocation1 [shape = 'u32[72,128]{1,0:T(1,128)}', space=vmem, size = 0x9000, scoped, tag = 'internal scratch']
  %s0 = inlined_call_operand.hbm [shape: f32[32,576], index: 0, kind: input, shape index: {}]
  %s1 = inlined_call_operand.hbm [shape: f32[576,128], index: 1, kind: input, shape index: {}]
  %s2 = inlined_call_operand.vmem [shape: f32[1,128], index: 2, kind: input, shape index: {}]
  %s3 = inlined_call_operand.hbm [shape: f32[32,128], index: 3, kind: output, shape index: {}]
  %s4 = sld [smem:[#allocation0]]
  $region30: #{tpu_custom_call.1} parent=0
    _
  %s6 = ssub.s32 1, %s4
  %s7 = scalar_select 0, %s6, %s4
  $region1: #{tpu_custom_call.1} parent=0
    #allocation2 [shape = 'u8[81920]{0}', space=vmem, size = 0x14000, scoped, tag = 'input window, operand 0, single buffered']
    #allocation3 [shape = 's32[1]{0}', space=sflag, size = 0x4, scoped, tag = 'scoped memory for tpu_custom_call.1']
    #allocation4 [shape = 's32[1]{0}', space=sflag, size = 0x4, scoped, tag = 'scoped memory for tpu_custom_call.1']
    #allocation5 [shape = 'u8[294912]{0}', space=vmem, size = 0x48000, scoped, tag = 'input window, operand 1, single buffered']
    #allocation6 [shape = 's32[1]{0}', space=sflag, size = 0x4, scoped, tag = 'scoped memory for tpu_custom_call.1']
    #allocation7 [shape = 'u8[16384]{0}', space=vmem, size = 0x4000, scoped, tag = 'output window, operand 0, single buffered']
    %8 = vsyncpa [#allocation3], 0
    %9 = vsyncpa [#allocation6], 0
    %10 = vsyncpa [#allocation4], 0
    // Predicated region
    $region2: #{tpu_custom_call.1} parent=1 // pred_check
      _
    $region3: #{tpu_custom_call.1} parent=1 // pred_check_branch
      %12 = sbr.rel (0) target = $region5
    $region4: #{tpu_custom_call.1} parent=1 // pred_region
      %14 = vsyncadd [#allocation3], 0
      %s15 = sshll.u32 %s0, 4
      %s16 = int_to_ptr.hbm [resolvable:$true] %s15
      %s17 = sshll.u32 [#allocation2], 4
      %s18 = int_to_ptr.vmem [resolvable:$true] %s17
      %23 = dma.hbm_to_vmem [thread:$0]  %s16, 2560, %s18, [#allocation3], 640, 640, 40
    $region5: #{tpu_custom_call.1} parent=1 // pred_fallthru
      _
    // Predicated region
    $region6: #{tpu_custom_call.1} parent=1 // pred_check
      _
    $region7: #{tpu_custom_call.1} parent=1 // pred_check_branch
      %25 = sbr.rel (0) target = $region9
    $region8: #{tpu_custom_call.1} parent=1 // pred_region
      %27 = vsyncadd [#allocation6], 0
      %s28 = sshll.u32 %s1, 4
      %s29 = int_to_ptr.hbm [resolvable:$true] %s28
      %s30 = sshll.u32 [#allocation5], 4
      %s31 = int_to_ptr.vmem [resolvable:$true] %s30
      %36 = dma.hbm_to_vmem [thread:$0]  %s29, 9216, %s31, [#allocation6], 128, 128, 8
    $region9: #{tpu_custom_call.1} parent=1 // pred_fallthru
      _
    // Predicated region
    $region10: #{tpu_custom_call.1} parent=1 // pred_check
      _
    $region11: #{tpu_custom_call.1} parent=1 // pred_check_branch
      %38 = sbr.rel (0) target = $region13
    $region12: #{tpu_custom_call.1} parent=1 // pred_region
      _
    $region13: #{tpu_custom_call.1} parent=1 // pred_fallthru
      _
    // Predicated region
    $region14: #{tpu_custom_call.1} parent=1 // pred_check
      _
    $region15: #{tpu_custom_call.1} parent=1 // pred_check_branch
      %40 = sbr.rel (0) target = $region17
    $region16: #{tpu_custom_call.1} parent=1 // pred_region
      %42 = dma.done [#allocation3], 2560
    $region17: #{tpu_custom_call.1} parent=1 // pred_fallthru
      _
    // Predicated region
    $region18: #{tpu_custom_call.1} parent=1 // pred_check
      _
    $region19: #{tpu_custom_call.1} parent=1 // pred_check_branch
      %44 = sbr.rel (0) target = $region21
    $region20: #{tpu_custom_call.1} parent=1 // pred_region
      %46 = dma.done [#allocation6], 9216
    $region21: #{tpu_custom_call.1} parent=1 // pred_fallthru
      _
    %v47 = vld [vmem:[#allocation2] sm:$0xff]
    %v48 = vld [vmem:[#allocation2 + $0x8] sm:$0xff]
    %v49 = vld [vmem:[#allocation2 + $0x10] sm:$0xff]
    %v50 = vld [vmem:[#allocation2 + $0x18] sm:$0xff]
    %v51 = vld [vmem:[#allocation2 + $0x20] sm:$0xff]
    %v52 = vld [vmem:[#allocation2 + $0x28] sm:$0xff]
    %v53 = vld [vmem:[#allocation2 + $0x30] sm:$0xff]
    %v54 = vld [vmem:[#allocation2 + $0x38] sm:$0xff]
    %v55 = vld [vmem:[#allocation2 + $0x40] sm:$0xff]
    %v56 = vld [vmem:[#allocation2 + $0x48] sm:$0xff]
    %v57 = vld [vmem:[#allocation2 + $0x50] sm:$0xff]
    %v58 = vld [vmem:[#allocation2 + $0x58] sm:$0xff]
    %v59 = vld [vmem:[#allocation2 + $0x60] sm:$0xff]
    %v60 = vld [vmem:[#allocation2 + $0x68] sm:$0xff]
    %v61 = vld [vmem:[#allocation2 + $0x70] sm:$0xff]
    %v62 = vld [vmem:[#allocation2 + $0x78] sm:$0xff]
    %v63 = vld [vmem:[#allocation2 + $0x80] sm:$0xff]
    %v64 = vld [vmem:[#allocation2 + $0x88] sm:$0xff]
    %v65 = vld [vmem:[#allocation2 + $0x90] sm:$0xff]
    %v66 = vld [vmem:[#allocation2 + $0x98] sm:$0xff]
    %v67 = vld [vmem:[#allocation5] sm:$0xff]
    %v68 = vld [vmem:[#allocation5 + $0x8] sm:$0xff]
    %v69 = vld [vmem:[#allocation5 + $0x10] sm:$0xff]
    %v70 = vld [vmem:[#allocation5 + $0x18] sm:$0xff]
    %v71 = vld [vmem:[#allocation5 + $0x20] sm:$0xff]
    %v72 = vld [vmem:[#allocation5 + $0x28] sm:$0xff]
    %v73 = vld [vmem:[#allocation5 + $0x30] sm:$0xff]
    %v74 = vld [vmem:[#allocation5 + $0x38] sm:$0xff]
    %v75 = vld [vmem:[#allocation5 + $0x40] sm:$0xff]
    %v76 = vld [vmem:[#allocation5 + $0x48] sm:$0xff]
    %v77 = vld [vmem:[#allocation5 + $0x50] sm:$0xff]
    %v78 = vld [vmem:[#allocation5 + $0x58] sm:$0xff]
    %v79 = vld [vmem:[#allocation5 + $0x60] sm:$0xff]
    %v80 = vld [vmem:[#allocation5 + $0x68] sm:$0xff]
    %v81 = vld [vmem:[#allocation5 + $0x70] sm:$0xff]
    %v82 = vld [vmem:[#allocation5 + $0x78] sm:$0xff]
    %v83 = vld [vmem:[#allocation5 + $0x80] sm:$0xff]
    %v84 = vld [vmem:[#allocation5 + $0x88] sm:$0xff]
    %v85 = vld [vmem:[#allocation5 + $0x90] sm:$0xff]
    %v86 = vld [vmem:[#allocation5 + $0x98] sm:$0xff]
    %v87 = vld [vmem:[#allocation5 + $0xa0] sm:$0xff]
    %v88 = vld [vmem:[#allocation5 + $0xa8] sm:$0xff]
    %v89 = vld [vmem:[#allocation5 + $0xb0] sm:$0xff]
    %v90 = vld [vmem:[#allocation5 + $0xb8] sm:$0xff]
    %v91 = vld [vmem:[#allocation5 + $0xc0] sm:$0xff]
    %v92 = vld [vmem:[#allocation5 + $0xc8] sm:$0xff]
    %v93 = vld [vmem:[#allocation5 + $0xd0] sm:$0xff]
    %v94 = vld [vmem:[#allocation5 + $0xd8] sm:$0xff]
    %v95 = vld [vmem:[#allocation5 + $0xe0] sm:$0xff]
    %v96 = vld [vmem:[#allocation5 + $0xe8] sm:$0xff]
    %v97 = vld [vmem:[#allocation5 + $0xf0] sm:$0xff]
    %v98 = vld [vmem:[#allocation5 + $0xf8] sm:$0xff]
    %v99 = vld [vmem:[#allocation5 + $0x100] sm:$0xff]
    %v100 = vld [vmem:[#allocation5 + $0x108] sm:$0xff]
    %v101 = vld [vmem:[#allocation5 + $0x110] sm:$0xff]
    %v102 = vld [vmem:[#allocation5 + $0x118] sm:$0xff]
    %v103 = vld [vmem:[#allocation5 + $0x120] sm:$0xff]
    %v104 = vld [vmem:[#allocation5 + $0x128] sm:$0xff]
    %v105 = vld [vmem:[#allocation5 + $0x130] sm:$0xff]
    %v106 = vld [vmem:[#allocation5 + $0x138] sm:$0xff]
    %v107 = vld [vmem:[#allocation5 + $0x140] sm:$0xff]
    %v108 = vld [vmem:[#allocation5 + $0x148] sm:$0xff]
    %v109 = vld [vmem:[#allocation5 + $0x150] sm:$0xff]
    %v110 = vld [vmem:[#allocation5 + $0x158] sm:$0xff]
    %v111 = vld [vmem:[#allocation5 + $0x160] sm:$0xff]
    %v112 = vld [vmem:[#allocation5 + $0x168] sm:$0xff]
    %v113 = vld [vmem:[#allocation5 + $0x170] sm:$0xff]
    %v114 = vld [vmem:[#allocation5 + $0x178] sm:$0xff]
    %v115 = vld [vmem:[#allocation5 + $0x180] sm:$0xff]
    %v116 = vld [vmem:[#allocation5 + $0x188] sm:$0xff]
    %v117 = vld [vmem:[#allocation5 + $0x190] sm:$0xff]
    %v118 = vld [vmem:[#allocation5 + $0x198] sm:$0xff]
    %v119 = vld [vmem:[#allocation5 + $0x1a0] sm:$0xff]
    %v120 = vld [vmem:[#allocation5 + $0x1a8] sm:$0xff]
    %v121 = vld [vmem:[#allocation5 + $0x1b0] sm:$0xff]
    %v122 = vld [vmem:[#allocation5 + $0x1b8] sm:$0xff]
    %v123 = vld [vmem:[#allocation5 + $0x1c0] sm:$0xff]
    %v124 = vld [vmem:[#allocation5 + $0x1c8] sm:$0xff]
    %v125 = vld [vmem:[#allocation5 + $0x1d0] sm:$0xff]
    %v126 = vld [vmem:[#allocation5 + $0x1d8] sm:$0xff]
    %v127 = vld [vmem:[#allocation5 + $0x1e0] sm:$0xff]
    %v128 = vld [vmem:[#allocation5 + $0x1e8] sm:$0xff]
    %v129 = vld [vmem:[#allocation5 + $0x1f0] sm:$0xff]
    %v130 = vld [vmem:[#allocation5 + $0x1f8] sm:$0xff]
    %v131 = vld [vmem:[#allocation5 + $0x200] sm:$0xff]
    %v132 = vld [vmem:[#allocation5 + $0x208] sm:$0xff]
    %v133 = vld [vmem:[#allocation5 + $0x210] sm:$0xff]
    %v134 = vld [vmem:[#allocation5 + $0x218] sm:$0xff]
    %v135 = vld [vmem:[#allocation5 + $0x220] sm:$0xff]
    %v136 = vld [vmem:[#allocation5 + $0x228] sm:$0xff]
    %v137 = vld [vmem:[#allocation5 + $0x230] sm:$0xff]
    %v138 = vld [vmem:[#allocation5 + $0x238] sm:$0xff]
    %v139 = vld [vmem:[%s2] sm:$0x1]
    %v141 = vperm.slane %v139, 0
    %vm143 = vcmask 523264
    %v145 = vsel %vm143, %v51, 0
    %v148 = vsel %vm143, %v56, 0
    %v151 = vsel %vm143, %v61, 0
    %v154 = vsel %vm143, %v66, 0
    %156 = vmatpush.msra.mxu0 %v82
    %157 = vmatpush.msra.mxu0 %v81
    %158 = vmatpush.msra.mxu0 %v80
    %159 = vmatpush.msra.mxu0 %v79
    %160 = vmatpush.msra.mxu0 %v78
    %161 = vmatpush.msra.mxu0 %v77
    %162 = vmatpush.msra.mxu0 %v76
    %163 = vmatpush.msra.mxu0 %v75
    %164 = vmatpush.msra.mxu0 %v74
    %165 = vmatpush.msra.mxu0 %v73
    %166 = vmatpush.msra.mxu0 %v72
    %167 = vmatpush.msra.mxu0 %v71
    %168 = vmatpush.msra.mxu0 %v70
    %169 = vmatpush.msra.mxu0 %v69
    %170 = vmatpush.msra.mxu0 %v68
    %171 = vmatpush.msra.mxu0 %v67
    %172 = vmatmul.f32.gmra.mxu0 %v47
    %v173 = vpop.f32.mrf.mxu0
    %v174 = vadd.f32 %v141, %v173
    %175 = vmatmul.f32.gmra.mxu0 %v52
    %v176 = vpop.f32.mrf.mxu0
    %v177 = vadd.f32 %v141, %v176
    %178 = vmatmul.f32.gmra.mxu0 %v57
    %v179 = vpop.f32.mrf.mxu0
    %v180 = vadd.f32 %v141, %v179
    %181 = vmatmul.f32.gmra.mxu0 %v62
    %v182 = vpop.f32.mrf.mxu0
    %v183 = vadd.f32 %v141, %v182
    %184 = vdwg.mxu0
    %185 = vmatpush.msra.mxu0 %v98
    %186 = vmatpush.msra.mxu0 %v97
    %187 = vmatpush.msra.mxu0 %v96
    %188 = vmatpush.msra.mxu0 %v95
    %189 = vmatpush.msra.mxu0 %v94
    %190 = vmatpush.msra.mxu0 %v93
    %191 = vmatpush.msra.mxu0 %v92
    %192 = vmatpush.msra.mxu0 %v91
    %193 = vmatpush.msra.mxu0 %v90
    %194 = vmatpush.msra.mxu0 %v89
    %195 = vmatpush.msra.mxu0 %v88
    %196 = vmatpush.msra.mxu0 %v87
    %197 = vmatpush.msra.mxu0 %v86
    %198 = vmatpush.msra.mxu0 %v85
    %199 = vmatpush.msra.mxu0 %v84
    %200 = vmatpush.msra.mxu0 %v83
    %201 = vmatmul.f32.gmra.mxu0 %v48
    %v202 = vpop.f32.mrf.mxu0
    %v203 = vadd.f32 %v174, %v202
    %204 = vmatmul.f32.gmra.mxu0 %v53
    %v205 = vpop.f32.mrf.mxu0
    %v206 = vadd.f32 %v177, %v205
    %207 = vmatmul.f32.gmra.mxu0 %v58
    %v208 = vpop.f32.mrf.mxu0
    %v209 = vadd.f32 %v180, %v208
    %210 = vmatmul.f32.gmra.mxu0 %v63
    %v211 = vpop.f32.mrf.mxu0
    %v212 = vadd.f32 %v183, %v211
    %213 = vdwg.mxu0
    %214 = vmatpush.msra.mxu0 %v114
    %215 = vmatpush.msra.mxu0 %v113
    %216 = vmatpush.msra.mxu0 %v112
    %217 = vmatpush.msra.mxu0 %v111
    %218 = vmatpush.msra.mxu0 %v110
    %219 = vmatpush.msra.mxu0 %v109
    %220 = vmatpush.msra.mxu0 %v108
    %221 = vmatpush.msra.mxu0 %v107
    %222 = vmatpush.msra.mxu0 %v106
    %223 = vmatpush.msra.mxu0 %v105
    %224 = vmatpush.msra.mxu0 %v104
    %225 = vmatpush.msra.mxu0 %v103
    %226 = vmatpush.msra.mxu0 %v102
    %227 = vmatpush.msra.mxu0 %v101
    %228 = vmatpush.msra.mxu0 %v100
    %229 = vmatpush.msra.mxu0 %v99
    %230 = vmatmul.f32.gmra.mxu0 %v49
    %v231 = vpop.f32.mrf.mxu0
    %v232 = vadd.f32 %v203, %v231
    %233 = vmatmul.f32.gmra.mxu0 %v54
    %v234 = vpop.f32.mrf.mxu0
    %v235 = vadd.f32 %v206, %v234
    %236 = vmatmul.f32.gmra.mxu0 %v59
    %v237 = vpop.f32.mrf.mxu0
    %v238 = vadd.f32 %v209, %v237
    %239 = vmatmul.f32.gmra.mxu0 %v64
    %v240 = vpop.f32.mrf.mxu0
    %v241 = vadd.f32 %v212, %v240
    %242 = vdwg.mxu0
    %243 = vmatpush.msra.mxu0 %v130
    %244 = vmatpush.msra.mxu0 %v129
    %245 = vmatpush.msra.mxu0 %v128
    %246 = vmatpush.msra.mxu0 %v127
    %247 = vmatpush.msra.mxu0 %v126
    %248 = vmatpush.msra.mxu0 %v125
    %249 = vmatpush.msra.mxu0 %v124
    %250 = vmatpush.msra.mxu0 %v123
    %251 = vmatpush.msra.mxu0 %v122
    %252 = vmatpush.msra.mxu0 %v121
    %253 = vmatpush.msra.mxu0 %v120
    %254 = vmatpush.msra.mxu0 %v119
    %255 = vmatpush.msra.mxu0 %v118
    %256 = vmatpush.msra.mxu0 %v117
    %257 = vmatpush.msra.mxu0 %v116
    %258 = vmatpush.msra.mxu0 %v115
    %259 = vmatmul.f32.gmra.mxu0 %v50
    %v260 = vpop.f32.mrf.mxu0
    %v261 = vadd.f32 %v232, %v260
    %262 = vmatmul.f32.gmra.mxu0 %v55
    %v263 = vpop.f32.mrf.mxu0
    %v264 = vadd.f32 %v235, %v263
    %265 = vmatmul.f32.gmra.mxu0 %v60
    %v266 = vpop.f32.mrf.mxu0
    %v267 = vadd.f32 %v238, %v266
    %268 = vmatmul.f32.gmra.mxu0 %v65
    %v269 = vpop.f32.mrf.mxu0
    %v270 = vadd.f32 %v241, %v269
    %271 = vdwg.mxu0
    %272 = vmatpush.msra.mxu0 0.0
    %273 = vmatpush.msra.mxu0 0.0
    %274 = vmatpush.msra.mxu0 0.0
    %275 = vmatpush.msra.mxu0 0.0
    %276 = vmatpush.msra.mxu0 0.0
    %277 = vmatpush.msra.mxu0 0.0
    %278 = vmatpush.msra.mxu0 0.0
    %279 = vmatpush.msra.mxu0 0.0
    %280 = vmatpush.msra.mxu0 %v138
    %281 = vmatpush.msra.mxu0 %v137
    %282 = vmatpush.msra.mxu0 %v136
    %283 = vmatpush.msra.mxu0 %v135
    %284 = vmatpush.msra.mxu0 %v134
    %285 = vmatpush.msra.mxu0 %v133
    %286 = vmatpush.msra.mxu0 %v132
    %287 = vmatpush.msra.mxu0 %v131
    %288 = vmatmul.f32.gmra.mxu0 %v145
    %v289 = vpop.f32.mrf.mxu0
    %v290 = vadd.f32 %v261, %v289
    %291 = vmatmul.f32.gmra.mxu0 %v148
    %v292 = vpop.f32.mrf.mxu0
    %v293 = vadd.f32 %v264, %v292
    %294 = vmatmul.f32.gmra.mxu0 %v151
    %v295 = vpop.f32.mrf.mxu0
    %v296 = vadd.f32 %v267, %v295
    %297 = vmatmul.f32.gmra.mxu0 %v154
    %v298 = vpop.f32.mrf.mxu0
    %v299 = vadd.f32 %v270, %v298
    %300 = vdwg.mxu0
    %301 = vst [vmem:[#allocation7] sm:$0xff] %v290
    %302 = vst [vmem:[#allocation7 + $0x8] sm:$0xff] %v293
    %303 = vst [vmem:[#allocation7 + $0x10] sm:$0xff] %v296
    %304 = vst [vmem:[#allocation7 + $0x18] sm:$0xff] %v299
    // Predicated region
    $region22: #{tpu_custom_call.1} parent=1 // pred_check
      _
    $region23: #{tpu_custom_call.1} parent=1 // pred_check_branch
      %306 = sbr.rel (0) target = $region25
    $region24: #{tpu_custom_call.1} parent=1 // pred_region
      %308 = vsyncadd [#allocation4], 0
      %s309 = sshll.u32 [#allocation7], 4
      %s310 = int_to_ptr.vmem [resolvable:$true] %s309
      %s311 = sshll.u32 %s3, 4
      %s312 = int_to_ptr.hbm [resolvable:$true] %s311
      %317 = dma.vmem_to_hbm [thread:$0]  %s310, 512, %s312, [#allocation4], 128, 128, 8
    $region25: #{tpu_custom_call.1} parent=1 // pred_fallthru
      _
    // Predicated region
    $region26: #{tpu_custom_call.1} parent=1 // pred_check
      _
    $region27: #{tpu_custom_call.1} parent=1 // pred_check_branch
      %319 = sbr.rel (0) target = $region29
    $region28: #{tpu_custom_call.1} parent=1 // pred_region
      %321 = dma.done [#allocation4], 512
    $region29: #{tpu_custom_call.1} parent=1 // pred_fallthru
      _
    %322 = vsyncpa [#allocation3], 1
    %323 = vsyncpa [#allocation6], 1
    %324 = vsyncpa [#allocation4], 1

// kernel: tpu_custom_call.1
$region0: #{tpu_custom_call.1}
  #allocation0 [shape = 'u32[]', space=smem, size = 0x4, offset = 0x4, fixed_abs, tag = 'smem constant byte address 0x4 - core index']
  #allocation1 [shape = 'u32[72,128]{1,0:T(1,128)}', space=vmem, size = 0x9000, scoped, tag = 'internal scratch']
  %s0 = inlined_call_operand.hbm [shape: f32[32,576], index: 0, kind: input, shape index: {}]
  %s1 = inlined_call_operand.hbm [shape: f32[576,128], index: 1, kind: input, shape index: {}]
  %s2 = inlined_call_operand.vmem [shape: f32[1,128], index: 2, kind: input, shape index: {}]
  %s3 = inlined_call_operand.hbm [shape: f32[32,128], index: 3, kind: output, shape index: {}]
  %s4 = sld [smem:[#allocation0]]
  $region30: #{tpu_custom_call.1} parent=0
    _
  %s6 = ssub.s32 1, %s4
  %s7 = scalar_select 0, %s6, %s4
  $region1: #{tpu_custom_call.1} parent=0
    #allocation2 [shape = 'u8[81920]{0}', space=vmem, size = 0x14000, scoped, tag = 'input window, operand 0, single buffered']
    #allocation3 [shape = 's32[1]{0}', space=sflag, size = 0x4, scoped, tag = 'scoped memory for tpu_custom_call.1']
    #allocation4 [shape = 's32[1]{0}', space=sflag, size = 0x4, scoped, tag = 'scoped memory for tpu_custom_call.1']
    #allocation5 [shape = 'u8[294912]{0}', space=vmem, size = 0x48000, scoped, tag = 'input window, operand 1, single buffered']
    #allocation6 [shape = 's32[1]{0}', space=sflag, size = 0x4, scoped, tag = 'scoped memory for tpu_custom_call.1']
    #allocation7 [shape = 'u8[16384]{0}', space=vmem, size = 0x4000, scoped, tag = 'output window, operand 0, single buffered']
    %8 = vsyncpa [#allocation3], 0
    %9 = vsyncpa [#allocation6], 0
    %10 = vsyncpa [#allocation4], 0
    // Predicated region
    $region2: #{tpu_custom_call.1} parent=1 // pred_check
      _
    $region3: #{tpu_custom_call.1} parent=1 // pred_check_branch
      %12 = sbr.rel (0) target = $region5
    $region4: #{tpu_custom_call.1} parent=1 // pred_region
      %14 = vsyncadd [#allocation3], 0
      %s15 = sshll.u32 %s0, 4
      %s16 = int_to_ptr.hbm [resolvable:$true] %s15
      %s17 = sshll.u32 [#allocation2], 4
      %s18 = int_to_ptr.vmem [resolvable:$true] %s17
      %23 = dma.hbm_to_vmem [thread:$0]  %s16, 2560, %s18, [#allocation3], 640, 640, 40
    $region5: #{tpu_custom_call.1} parent=1 // pred_fallthru
      _
    // Predicated region
    $region6: #{tpu_custom_call.1} parent=1 // pred_check
      _
    $region7: #{tpu_custom_call.1} parent=1 // pred_check_branch
      %25 = sbr.rel (0) target = $region9
    $region8: #{tpu_custom_call.1} parent=1 // pred_region
      %27 = vsyncadd [#allocation6], 0
      %s28 = sshll.u32 %s1, 4
      %s29 = int_to_ptr.hbm [resolvable:$true] %s28
      %s30 = sshll.u32 [#allocation5], 4
      %s31 = int_to_ptr.vmem [resolvable:$true] %s30
      %36 = dma.hbm_to_vmem [thread:$0]  %s29, 9216, %s31, [#allocation6], 128, 128, 8
    $region9: #{tpu_custom_call.1} parent=1 // pred_fallthru
      _
    // Predicated region
    $region10: #{tpu_custom_call.1} parent=1 // pred_check
      _
    $region11: #{tpu_custom_call.1} parent=1 // pred_check_branch
      %38 = sbr.rel (0) target = $region13
    $region12: #{tpu_custom_call.1} parent=1 // pred_region
      _
    $region13: #{tpu_custom_call.1} parent=1 // pred_fallthru
      _
    // Predicated region
    $region14: #{tpu_custom_call.1} parent=1 // pred_check
      _
    $region15: #{tpu_custom_call.1} parent=1 // pred_check_branch
      %40 = sbr.rel (0) target = $region17
    $region16: #{tpu_custom_call.1} parent=1 // pred_region
      %42 = dma.done [#allocation3], 2560
    $region17: #{tpu_custom_call.1} parent=1 // pred_fallthru
      _
    // Predicated region
    $region18: #{tpu_custom_call.1} parent=1 // pred_check
      _
    $region19: #{tpu_custom_call.1} parent=1 // pred_check_branch
      %44 = sbr.rel (0) target = $region21
    $region20: #{tpu_custom_call.1} parent=1 // pred_region
      %46 = dma.done [#allocation6], 9216
    $region21: #{tpu_custom_call.1} parent=1 // pred_fallthru
      _
    %v47 = vld [vmem:[#allocation2] sm:$0xff]
    %v48 = vld [vmem:[#allocation2 + $0x8] sm:$0xff]
    %v49 = vld [vmem:[#allocation2 + $0x10] sm:$0xff]
    %v50 = vld [vmem:[#allocation2 + $0x18] sm:$0xff]
    %v51 = vld [vmem:[#allocation2 + $0x20] sm:$0xff]
    %v52 = vld [vmem:[#allocation2 + $0x28] sm:$0xff]
    %v53 = vld [vmem:[#allocation2 + $0x30] sm:$0xff]
    %v54 = vld [vmem:[#allocation2 + $0x38] sm:$0xff]
    %v55 = vld [vmem:[#allocation2 + $0x40] sm:$0xff]
    %v56 = vld [vmem:[#allocation2 + $0x48] sm:$0xff]
    %v57 = vld [vmem:[#allocation2 + $0x50] sm:$0xff]
    %v58 = vld [vmem:[#allocation2 + $0x58] sm:$0xff]
    %v59 = vld [vmem:[#allocation2 + $0x60] sm:$0xff]
    %v60 = vld [vmem:[#allocation2 + $0x68] sm:$0xff]
    %v61 = vld [vmem:[#allocation2 + $0x70] sm:$0xff]
    %v62 = vld [vmem:[#allocation2 + $0x78] sm:$0xff]
    %v63 = vld [vmem:[#allocation2 + $0x80] sm:$0xff]
    %v64 = vld [vmem:[#allocation2 + $0x88] sm:$0xff]
    %v65 = vld [vmem:[#allocation2 + $0x90] sm:$0xff]
    %v66 = vld [vmem:[#allocation2 + $0x98] sm:$0xff]
    %v67 = vld [vmem:[#allocation5] sm:$0xff]
    %v68 = vld [vmem:[#allocation5 + $0x8] sm:$0xff]
    %v69 = vld [vmem:[#allocation5 + $0x10] sm:$0xff]
    %v70 = vld [vmem:[#allocation5 + $0x18] sm:$0xff]
    %v71 = vld [vmem:[#allocation5 + $0x20] sm:$0xff]
    %v72 = vld [vmem:[#allocation5 + $0x28] sm:$0xff]
    %v73 = vld [vmem:[#allocation5 + $0x30] sm:$0xff]
    %v74 = vld [vmem:[#allocation5 + $0x38] sm:$0xff]
    %v75 = vld [vmem:[#allocation5 + $0x40] sm:$0xff]
    %v76 = vld [vmem:[#allocation5 + $0x48] sm:$0xff]
    %v77 = vld [vmem:[#allocation5 + $0x50] sm:$0xff]
    %v78 = vld [vmem:[#allocation5 + $0x58] sm:$0xff]
    %v79 = vld [vmem:[#allocation5 + $0x60] sm:$0xff]
    %v80 = vld [vmem:[#allocation5 + $0x68] sm:$0xff]
    %v81 = vld [vmem:[#allocation5 + $0x70] sm:$0xff]
    %v82 = vld [vmem:[#allocation5 + $0x78] sm:$0xff]
    %v83 = vld [vmem:[#allocation5 + $0x80] sm:$0xff]
    %v84 = vld [vmem:[#allocation5 + $0x88] sm:$0xff]
    %v85 = vld [vmem:[#allocation5 + $0x90] sm:$0xff]
    %v86 = vld [vmem:[#allocation5 + $0x98] sm:$0xff]
    %v87 = vld [vmem:[#allocation5 + $0xa0] sm:$0xff]
    %v88 = vld [vmem:[#allocation5 + $0xa8] sm:$0xff]
    %v89 = vld [vmem:[#allocation5 + $0xb0] sm:$0xff]
    %v90 = vld [vmem:[#allocation5 + $0xb8] sm:$0xff]
    %v91 = vld [vmem:[#allocation5 + $0xc0] sm:$0xff]
    %v92 = vld [vmem:[#allocation5 + $0xc8] sm:$0xff]
    %v93 = vld [vmem:[#allocation5 + $0xd0] sm:$0xff]
    %v94 = vld [vmem:[#allocation5 + $0xd8] sm:$0xff]
    %v95 = vld [vmem:[#allocation5 + $0xe0] sm:$0xff]
    %v96 = vld [vmem:[#allocation5 + $0xe8] sm:$0xff]
    %v97 = vld [vmem:[#allocation5 + $0xf0] sm:$0xff]
    %v98 = vld [vmem:[#allocation5 + $0xf8] sm:$0xff]
    %v99 = vld [vmem:[#allocation5 + $0x100] sm:$0xff]
    %v100 = vld [vmem:[#allocation5 + $0x108] sm:$0xff]
    %v101 = vld [vmem:[#allocation5 + $0x110] sm:$0xff]
    %v102 = vld [vmem:[#allocation5 + $0x118] sm:$0xff]
    %v103 = vld [vmem:[#allocation5 + $0x120] sm:$0xff]
    %v104 = vld [vmem:[#allocation5 + $0x128] sm:$0xff]
    %v105 = vld [vmem:[#allocation5 + $0x130] sm:$0xff]
    %v106 = vld [vmem:[#allocation5 + $0x138] sm:$0xff]
    %v107 = vld [vmem:[#allocation5 + $0x140] sm:$0xff]
    %v108 = vld [vmem:[#allocation5 + $0x148] sm:$0xff]
    %v109 = vld [vmem:[#allocation5 + $0x150] sm:$0xff]
    %v110 = vld [vmem:[#allocation5 + $0x158] sm:$0xff]
    %v111 = vld [vmem:[#allocation5 + $0x160] sm:$0xff]
    %v112 = vld [vmem:[#allocation5 + $0x168] sm:$0xff]
    %v113 = vld [vmem:[#allocation5 + $0x170] sm:$0xff]
    %v114 = vld [vmem:[#allocation5 + $0x178] sm:$0xff]
    %v115 = vld [vmem:[#allocation5 + $0x180] sm:$0xff]
    %v116 = vld [vmem:[#allocation5 + $0x188] sm:$0xff]
    %v117 = vld [vmem:[#allocation5 + $0x190] sm:$0xff]
    %v118 = vld [vmem:[#allocation5 + $0x198] sm:$0xff]
    %v119 = vld [vmem:[#allocation5 + $0x1a0] sm:$0xff]
    %v120 = vld [vmem:[#allocation5 + $0x1a8] sm:$0xff]
    %v121 = vld [vmem:[#allocation5 + $0x1b0] sm:$0xff]
    %v122 = vld [vmem:[#allocation5 + $0x1b8] sm:$0xff]
    %v123 = vld [vmem:[#allocation5 + $0x1c0] sm:$0xff]
    %v124 = vld [vmem:[#allocation5 + $0x1c8] sm:$0xff]
    %v125 = vld [vmem:[#allocation5 + $0x1d0] sm:$0xff]
    %v126 = vld [vmem:[#allocation5 + $0x1d8] sm:$0xff]
    %v127 = vld [vmem:[#allocation5 + $0x1e0] sm:$0xff]
    %v128 = vld [vmem:[#allocation5 + $0x1e8] sm:$0xff]
    %v129 = vld [vmem:[#allocation5 + $0x1f0] sm:$0xff]
    %v130 = vld [vmem:[#allocation5 + $0x1f8] sm:$0xff]
    %v131 = vld [vmem:[#allocation5 + $0x200] sm:$0xff]
    %v132 = vld [vmem:[#allocation5 + $0x208] sm:$0xff]
    %v133 = vld [vmem:[#allocation5 + $0x210] sm:$0xff]
    %v134 = vld [vmem:[#allocation5 + $0x218] sm:$0xff]
    %v135 = vld [vmem:[#allocation5 + $0x220] sm:$0xff]
    %v136 = vld [vmem:[#allocation5 + $0x228] sm:$0xff]
    %v137 = vld [vmem:[#allocation5 + $0x230] sm:$0xff]
    %v138 = vld [vmem:[#allocation5 + $0x238] sm:$0xff]
    %v139 = vld [vmem:[%s2] sm:$0x1]
    %v141 = vperm.slane %v139, 0
    %vm143 = vcmask 523264
    %v145 = vsel %vm143, %v51, 0
    %v148 = vsel %vm143, %v56, 0
    %v151 = vsel %vm143, %v61, 0
    %v154 = vsel %vm143, %v66, 0
    %156 = vmatpush.msra.mxu0 %v82
    %157 = vmatpush.msra.mxu0 %v81
    %158 = vmatpush.msra.mxu0 %v80
    %159 = vmatpush.msra.mxu0 %v79
    %160 = vmatpush.msra.mxu0 %v78
    %161 = vmatpush.msra.mxu0 %v77
    %162 = vmatpush.msra.mxu0 %v76
    %163 = vmatpush.msra.mxu0 %v75
    %164 = vmatpush.msra.mxu0 %v74
    %165 = vmatpush.msra.mxu0 %v73
    %166 = vmatpush.msra.mxu0 %v72
    %167 = vmatpush.msra.mxu0 %v71
    %168 = vmatpush.msra.mxu0 %v70
    %169 = vmatpush.msra.mxu0 %v69
    %170 = vmatpush.msra.mxu0 %v68
    %171 = vmatpush.msra.mxu0 %v67
    %172 = vmatmul.f32.gmra.mxu0 %v47
    %v173 = vpop.f32.mrf.mxu0
    %v174 = vadd.f32 %v141, %v173
    %175 = vmatmul.f32.gmra.mxu0 %v52
    %v176 = vpop.f32.mrf.mxu0
    %v177 = vadd.f32 %v141, %v176
    %178 = vmatmul.f32.gmra.mxu0 %v57
    %v179 = vpop.f32.mrf.mxu0
    %v180 = vadd.f32 %v141, %v179
    %181 = vmatmul.f32.gmra.mxu0 %v62
    %v182 = vpop.f32.mrf.mxu0
    %v183 = vadd.f32 %v141, %v182
    %184 = vdwg.mxu0
    %185 = vmatpush.msra.mxu0 %v98
    %186 = vmatpush.msra.mxu0 %v97
    %187 = vmatpush.msra.mxu0 %v96
    %188 = vmatpush.msra.mxu0 %v95
    %189 = vmatpush.msra.mxu0 %v94
    %190 = vmatpush.msra.mxu0 %v93
    %191 = vmatpush.msra.mxu0 %v92
    %192 = vmatpush.msra.mxu0 %v91
    %193 = vmatpush.msra.mxu0 %v90
    %194 = vmatpush.msra.mxu0 %v89
    %195 = vmatpush.msra.mxu0 %v88
    %196 = vmatpush.msra.mxu0 %v87
    %197 = vmatpush.msra.mxu0 %v86
    %198 = vmatpush.msra.mxu0 %v85
    %199 = vmatpush.msra.mxu0 %v84
    %200 = vmatpush.msra.mxu0 %v83
    %201 = vmatmul.f32.gmra.mxu0 %v48
    %v202 = vpop.f32.mrf.mxu0
    %v203 = vadd.f32 %v174, %v202
    %204 = vmatmul.f32.gmra.mxu0 %v53
    %v205 = vpop.f32.mrf.mxu0
    %v206 = vadd.f32 %v177, %v205
    %207 = vmatmul.f32.gmra.mxu0 %v58
    %v208 = vpop.f32.mrf.mxu0
    %v209 = vadd.f32 %v180, %v208
    %210 = vmatmul.f32.gmra.mxu0 %v63
    %v211 = vpop.f32.mrf.mxu0
    %v212 = vadd.f32 %v183, %v211
    %213 = vdwg.mxu0
    %214 = vmatpush.msra.mxu0 %v114
    %215 = vmatpush.msra.mxu0 %v113
    %216 = vmatpush.msra.mxu0 %v112
    %217 = vmatpush.msra.mxu0 %v111
    %218 = vmatpush.msra.mxu0 %v110
    %219 = vmatpush.msra.mxu0 %v109
    %220 = vmatpush.msra.mxu0 %v108
    %221 = vmatpush.msra.mxu0 %v107
    %222 = vmatpush.msra.mxu0 %v106
    %223 = vmatpush.msra.mxu0 %v105
    %224 = vmatpush.msra.mxu0 %v104
    %225 = vmatpush.msra.mxu0 %v103
    %226 = vmatpush.msra.mxu0 %v102
    %227 = vmatpush.msra.mxu0 %v101
    %228 = vmatpush.msra.mxu0 %v100
    %229 = vmatpush.msra.mxu0 %v99
    %230 = vmatmul.f32.gmra.mxu0 %v49
    %v231 = vpop.f32.mrf.mxu0
    %v232 = vadd.f32 %v203, %v231
    %233 = vmatmul.f32.gmra.mxu0 %v54
    %v234 = vpop.f32.mrf.mxu0
    %v235 = vadd.f32 %v206, %v234
    %236 = vmatmul.f32.gmra.mxu0 %v59
    %v237 = vpop.f32.mrf.mxu0
    %v238 = vadd.f32 %v209, %v237
    %239 = vmatmul.f32.gmra.mxu0 %v64
    %v240 = vpop.f32.mrf.mxu0
    %v241 = vadd.f32 %v212, %v240
    %242 = vdwg.mxu0
    %243 = vmatpush.msra.mxu0 %v130
    %244 = vmatpush.msra.mxu0 %v129
    %245 = vmatpush.msra.mxu0 %v128
    %246 = vmatpush.msra.mxu0 %v127
    %247 = vmatpush.msra.mxu0 %v126
    %248 = vmatpush.msra.mxu0 %v125
    %249 = vmatpush.msra.mxu0 %v124
    %250 = vmatpush.msra.mxu0 %v123
    %251 = vmatpush.msra.mxu0 %v122
    %252 = vmatpush.msra.mxu0 %v121
    %253 = vmatpush.msra.mxu0 %v120
    %254 = vmatpush.msra.mxu0 %v119
    %255 = vmatpush.msra.mxu0 %v118
    %256 = vmatpush.msra.mxu0 %v117
    %257 = vmatpush.msra.mxu0 %v116
    %258 = vmatpush.msra.mxu0 %v115
    %259 = vmatmul.f32.gmra.mxu0 %v50
    %v260 = vpop.f32.mrf.mxu0
    %v261 = vadd.f32 %v232, %v260
    %262 = vmatmul.f32.gmra.mxu0 %v55
    %v263 = vpop.f32.mrf.mxu0
    %v264 = vadd.f32 %v235, %v263
    %265 = vmatmul.f32.gmra.mxu0 %v60
    %v266 = vpop.f32.mrf.mxu0
    %v267 = vadd.f32 %v238, %v266
    %268 = vmatmul.f32.gmra.mxu0 %v65
    %v269 = vpop.f32.mrf.mxu0
    %v270 = vadd.f32 %v241, %v269
    %271 = vdwg.mxu0
    %272 = vmatpush.msra.mxu0 0.0
    %273 = vmatpush.msra.mxu0 0.0
    %274 = vmatpush.msra.mxu0 0.0
    %275 = vmatpush.msra.mxu0 0.0
    %276 = vmatpush.msra.mxu0 0.0
    %277 = vmatpush.msra.mxu0 0.0
    %278 = vmatpush.msra.mxu0 0.0
    %279 = vmatpush.msra.mxu0 0.0
    %280 = vmatpush.msra.mxu0 %v138
    %281 = vmatpush.msra.mxu0 %v137
    %282 = vmatpush.msra.mxu0 %v136
    %283 = vmatpush.msra.mxu0 %v135
    %284 = vmatpush.msra.mxu0 %v134
    %285 = vmatpush.msra.mxu0 %v133
    %286 = vmatpush.msra.mxu0 %v132
    %287 = vmatpush.msra.mxu0 %v131
    %288 = vmatmul.f32.gmra.mxu0 %v145
    %v289 = vpop.f32.mrf.mxu0
    %v290 = vadd.f32 %v261, %v289
    %291 = vmatmul.f32.gmra.mxu0 %v148
    %v292 = vpop.f32.mrf.mxu0
    %v293 = vadd.f32 %v264, %v292
    %294 = vmatmul.f32.gmra.mxu0 %v151
    %v295 = vpop.f32.mrf.mxu0
    %v296 = vadd.f32 %v267, %v295
    %297 = vmatmul.f32.gmra.mxu0 %v154
    %v298 = vpop.f32.mrf.mxu0
    %v299 = vadd.f32 %v270, %v298
    %300 = vdwg.mxu0
    %301 = vst [vmem:[#allocation7] sm:$0xff] %v290
    %302 = vst [vmem:[#allocation7 + $0x8] sm:$0xff] %v293
    %303 = vst [vmem:[#allocation7 + $0x10] sm:$0xff] %v296
    %304 = vst [vmem:[#allocation7 + $0x18] sm:$0xff] %v299
    // Predicated region
    $region22: #{tpu_custom_call.1} parent=1 // pred_check
      _
    $region23: #{tpu_custom_call.1} parent=1 // pred_check_branch
      %306 = sbr.rel (0) target = $region25
    $region24: #{tpu_custom_call.1} parent=1 // pred_region
      %308 = vsyncadd [#allocation4], 0
      %s309 = sshll.u32 [#allocation7], 4
      %s310 = int_to_ptr.vmem [resolvable:$true] %s309
      %s311 = sshll.u32 %s3, 4
      %s312 = int_to_ptr.hbm [resolvable:$true] %s311
      %317 = dma.vmem_to_hbm [thread:$0]  %s310, 512, %s312, [#allocation4], 128, 128, 8
    $region25: #{tpu_custom_call.1} parent=1 // pred_fallthru
      _
    // Predicated region
    $region26: #{tpu_custom_call.1} parent=1 // pred_check
      _
    $region27: #{tpu_custom_call.1} parent=1 // pred_check_branch
      %319 = sbr.rel (0) target = $region29
    $region28: #{tpu_custom_call.1} parent=1 // pred_region
      %321 = dma.done [#allocation4], 512
    $region29: #{tpu_custom_call.1} parent=1 // pred_fallthru
      _
    %322 = vsyncpa [#allocation3], 1
    %323 = vsyncpa [#allocation6], 1
    %324 = vsyncpa [#allocation4], 1

</llo_original>
